<compile_context>
chip_gen: v6e
topology: v6e:2x2x1
jax: 0.10.0
libtpu: 0.0.40
codegen_flags: <defaults>
</compile_context>

<pallas_src>
import math

import jax
import jax.numpy as jnp
from jax.experimental import pallas as pl
from jax.experimental.pallas import tpu as pltpu


def _round_up(x, m):
    return ((x + m - 1) // m) * m


# --------------------------------------------------------------------------
# Pallas kernel: one grid step per (batch sample, M-tile).
# Expert mixing already happened in the wrapper, so the kernel is a single
# lane-dense MXU matmul (bf16 operands, f32 accumulation) plus a bias add.
# --------------------------------------------------------------------------
def _condconv_kernel(w_ref, b_ref, x_ref, o_ref):
    # x_ref: (1, TILE_M, Kdim_pad)   bf16 im2col patches for this sample/tile
    # w_ref: (1, Kdim_pad, Cout_pad) bf16 per-sample mixed conv weights
    # b_ref: (1, 1, Cout_pad)        f32  per-sample mixed bias
    acc = jnp.dot(x_ref[0], w_ref[0], preferred_element_type=jnp.float32)
    acc = acc + b_ref[0]                       # (1, Cout_pad) broadcasts
    o_ref[...] = acc[None].astype(o_ref.dtype)


# --------------------------------------------------------------------------
# Padding logic replicated from the PyTorch module (get_padding_value /
# conv2d_same).  Shapes are static under jit, so even the "dynamic" SAME
# padding resolves to static per-side pads here.
# --------------------------------------------------------------------------
def _resolve_padding(padding, k, s, d, ih, iw):
    def _same_pad(i):
        return max((-(i // -s) - 1) * s + (k - 1) * d + 1 - i, 0)

    if isinstance(padding, str):
        p = padding.lower()
        if p == 'same':
            if s == 1 and (d * (k - 1)) % 2 == 0:            # static SAME
                pv = (s - 1 + d * (k - 1)) // 2
                return pv, pv, pv, pv
            ph, pw = _same_pad(ih), _same_pad(iw)            # dynamic SAME
            return ph // 2, ph - ph // 2, pw // 2, pw - pw // 2
        elif p == 'valid':
            return 0, 0, 0, 0
        else:                                                # '' default
            pv = (s - 1 + d * (k - 1)) // 2
            return pv, pv, pv, pv
    pv = int(padding)
    return pv, pv, pv, pv


# --------------------------------------------------------------------------
# Wrapper (NCHW in / NCHW out, same as torch CondConv2d.forward)
# --------------------------------------------------------------------------
def cond_conv2d(x_nchw, routing_weights, weight_flat, bias_param, *,
                out_channels, kernel_size=3, stride=1, padding='', dilation=1,
                groups=1, num_experts=4):
    # TODO(synk): groups > 1 (grouped/depthwise CondConv) not implemented here.
    assert groups == 1, "only groups == 1 supported in this Pallas kernel"

    B, Cin, H, W = x_nchw.shape
    KH = KW = int(kernel_size)
    SH = SW = int(stride)
    DH = DW = int(dilation)
    E = int(num_experts)
    Cout = int(out_channels)

    pt, pb, pleft, pright = _resolve_padding(padding, KH, SH, DH, H, W)
    Hp, Wp = H + pt + pb, W + pleft + pright
    Ho = (Hp - DH * (KH - 1) - 1) // SH + 1
    Wo = (Wp - DW * (KW - 1) - 1) // SW + 1
    M = Ho * Wo
    Kdim = KH * KW * Cin

    LANE = 128
    # v6e/v7x MXU is 256 wide; only go 256 when Cout actually needs it.
    lane_n = 256 if Cout > LANE else LANE
    Cout_pad = _round_up(Cout, lane_n)
    # pad the contraction dim lane-dense only when it is already large.
    Kdim_pad = _round_up(Kdim, LANE) if Kdim >= LANE else Kdim

    out_itemsize = jnp.dtype(x_nchw.dtype).itemsize

    # --- generation-aware VMEM budgeting + M tile selection ----------------
    try:
        vmem_cap = int(pltpu.get_tpu_info().vmem_capacity_bytes)
    except Exception:
        vmem_cap = 64 * 1024 * 1024       # conservative (v7x per-TC size)
    budget = int(0.6 * vmem_cap)          # leave room for compiler scratch

    def _vmem_need(tile_m):
        # double-buffered streamed blocks (patches, output, per-sample weight)
        return (2 * tile_m * Kdim_pad * 2              # patches (bf16)
                + 2 * tile_m * Cout_pad * out_itemsize  # output tile
                + 2 * Kdim_pad * Cout_pad * 2           # mixed weights (bf16)
                + 2 * Cout_pad * 4)                     # mixed bias (f32)

    m16 = _round_up(M, 16)                # bf16 sublanes pack in row pairs
    TILE_M = 16
    for cand in (2048, 1024, 512, 256, 128, 64, 32, 16):
        if cand <= m16 and _vmem_need(cand) <= budget:
            TILE_M = cand
            break
    M_pad = _round_up(M, TILE_M)

    vmem_limit = int(min(int(0.85 * vmem_cap),
                         max(_vmem_need(TILE_M) + (16 << 20), 32 << 20)))

    # --- expert mixing, hoisted (exact f32, same op as torch's routing @ W) -
    w5 = weight_flat.reshape(E, Cout, Cin, KH, KW).astype(jnp.float32)
    # K ordering (ky, kx, cin) matches the im2col patch layout below.
    w_k = jnp.transpose(w5, (0, 3, 4, 2, 1)).reshape(E, Kdim, Cout)
    w_mix = jnp.einsum('be,ekn->bkn', routing_weights.astype(jnp.float32), w_k,
                       precision=jax.lax.Precision.HIGHEST)
    w_mix = jnp.pad(w_mix,
                    ((0, 0), (0, Kdim_pad - Kdim), (0, Cout_pad - Cout)))
    w_mix = w_mix.astype(jnp.bfloat16)                  # halves per-sample DMA

    if bias_param is None:
        bias_b = jnp.zeros((B, 1, Cout_pad), jnp.float32)
    else:
        bvec = jnp.einsum('be,en->bn', routing_weights.astype(jnp.float32),
                          bias_param.astype(jnp.float32),
                          precision=jax.lax.Precision.HIGHEST)
        bias_b = jnp.pad(bvec, ((0, 0), (0, Cout_pad - Cout)))[:, None, :]

    # --- NCHW -> NHWC, spatial pad, im2col, bf16 cast (layout glue) ---------
    # TODO(synk): for very low arithmetic-intensity configs on v5e the KHxKW
    # im2col read amplification argues for a KH*KW accumulate-matmul variant.
    x_nhwc = jnp.transpose(x_nchw, (0, 2, 3, 1))
    x_pad = jnp.pad(x_nhwc, ((0, 0), (pt, pb), (pleft, pright), (0, 0)))
    x_pad = x_pad.astype(jnp.bfloat16)
    taps = []
    for ky in range(KH):
        for kx in range(KW):
            dy, dx = ky * DH, kx * DW
            taps.append(x_pad[:, dy:dy + SH * (Ho - 1) + 1:SH,
                              dx:dx + SW * (Wo - 1) + 1:SW, :])
    patches = jnp.concatenate(taps, axis=-1).reshape(B, M, Kdim)
    if M_pad != M or Kdim_pad != Kdim:
        patches = jnp.pad(patches,
                          ((0, 0), (0, M_pad - M), (0, Kdim_pad - Kdim)))

    flops = 2 * B * M_pad * Kdim_pad * Cout_pad
    bytes_accessed = (B * M_pad * Kdim_pad * 2          # patches in
                      + B * Kdim_pad * Cout_pad * 2     # mixed weights in
                      + B * Cout_pad * 4                # bias in
                      + B * M_pad * Cout_pad * out_itemsize)  # output
    cost = pl.CostEstimate(flops=flops, transcendentals=0,
                           bytes_accessed=bytes_accessed)

    out_flat = pl.pallas_call(
        _condconv_kernel,
        out_shape=jax.ShapeDtypeStruct((B, M_pad, Cout_pad), x_nchw.dtype),
        grid_spec=pltpu.PrefetchScalarGridSpec(
            num_scalar_prefetch=0,
            grid=(B, M_pad // TILE_M),
            in_specs=[
                # per-sample mixed weights: constant across the M axis, so the
                # pipeline only re-DMAs them when b changes.
                pl.BlockSpec((1, Kdim_pad, Cout_pad), lambda b, m: (b, 0, 0)),
                pl.BlockSpec((1, 1, Cout_pad), lambda b, m: (b, 0, 0)),
                pl.BlockSpec((1, TILE_M, Kdim_pad), lambda b, m: (b, m, 0)),
            ],
            out_specs=pl.BlockSpec((1, TILE_M, Cout_pad),
                                   lambda b, m: (b, m, 0)),
        ),
        compiler_params=pltpu.CompilerParams(
            dimension_semantics=("parallel", "parallel"),
            vmem_limit_bytes=vmem_limit),
        cost_estimate=cost,
    )(w_mix, bias_b, patches)

    out = out_flat[:, :M, :Cout].reshape(B, Ho, Wo, Cout)
    return jnp.transpose(out, (0, 3, 1, 2))   # back to NCHW


# --------------------------------------------------------------------------
# Pure-JAX f32 reference (mirrors torch F.conv2d path) for a correctness check
# --------------------------------------------------------------------------
def _ref_cond_conv2d(x, routing, weight_flat, bias_param, *, out_channels,
                     kernel_size, stride, padding, dilation, num_experts):
    B, Cin, H, W = x.shape
    KH = KW = kernel_size
    Cout = out_channels
    pt, pb, pleft, pright = _resolve_padding(padding, KH, stride, dilation, H, W)
    w = (routing @ weight_flat).reshape(B, Cout, Cin, KH, KW)
    xp = jnp.pad(x, ((0, 0), (0, 0), (pt, pb), (pleft, pright)))

    def per_sample(xi, wi):
        return jax.lax.conv_general_dilated(
            xi[None], wi, window_strides=(stride, stride), padding='VALID',
            rhs_dilation=(dilation, dilation),
            dimension_numbers=('NCHW', 'OIHW', 'NCHW'))[0]

    out = jax.vmap(per_sample)(xp, w)
    if bias_param is not None:
        bvec = routing @ bias_param          # (B, Cout)
        out = out + bvec[:, :, None, None]
    return out


if __name__ == "__main__":
    # module config (defaults of CondConv2d except bias=True to exercise bias)
    B, Cin, Cout, H, W = 2, 4, 8, 16, 16
    kernel_size, stride, padding, dilation, groups = 3, 1, '', 1, 1
    num_experts = 4

    key = jax.random.PRNGKey(0)
    k1, k2, k3, k4 = jax.random.split(key, 4)

    fan_in = Cin * kernel_size * kernel_size
    bound = 1.0 / math.sqrt(fan_in)          # kaiming_uniform(a=sqrt(5)) bound
    weight = jax.random.uniform(
        k1, (num_experts, Cout * Cin * kernel_size * kernel_size),
        minval=-bound, maxval=bound, dtype=jnp.float32)
    bias = jax.random.uniform(
        k2, (num_experts, Cout), minval=-bound, maxval=bound, dtype=jnp.float32)

    x = jax.random.normal(k3, (B, Cin, H, W), dtype=jnp.float32)
    routing = jax.nn.sigmoid(jax.random.normal(k4, (B, num_experts),
                                               dtype=jnp.float32))

    out = cond_conv2d(x, routing, weight, bias,
                      out_channels=Cout, kernel_size=kernel_size,
                      stride=stride, padding=padding, dilation=dilation,
                      groups=groups, num_experts=num_experts)
    out = jax.block_until_ready(out)

    ref = _ref_cond_conv2d(x, routing, weight, bias,
                           out_channels=Cout, kernel_size=kernel_size,
                           stride=stride, padding=padding, dilation=dilation,
                           num_experts=num_experts)
    ref = jax.block_until_ready(ref)

    assert out.shape == ref.shape, (out.shape, ref.shape)
    # kernel feeds the MXU bf16 inputs (f32 accumulation); scale the tolerance
    # mildly with the contraction length so larger Cin configs stay fair.
    tol = 2e-2 * max(1.0, math.sqrt(fan_in / 36.0))
    assert jnp.allclose(out, ref, rtol=tol, atol=tol), (
        float(jnp.max(jnp.abs(out - ref))))
    print("KERNEL_OK")
</pallas_src>

<mosaic_0001>
module attributes {stable_mosaic.version = 11 : i64} {
  func.func @_condconv_kernel(%arg0: i32, %arg1: i32, %arg2: memref<1x36x128xbf16, #tpu.memory_space<vmem>>, %arg3: memref<1x1x128xf32, #tpu.memory_space<vmem>>, %arg4: memref<1x256x36xbf16, #tpu.memory_space<vmem>>, %arg5: memref<1x256x128xf32, #tpu.memory_space<vmem>>) attributes {dimension_semantics = [#tpu.dimension_semantics<parallel>, #tpu.dimension_semantics<parallel>], iteration_bounds = array<i64: 2, 1>, scalar_prefetch = 0 : i64, scratch_operands = 0 : i64, tpu.core_type = #tpu.core_type<tc>, window_params = [{transform_indices = @transform_0, window_bounds = array<i64: 1, 36, 128>}, {transform_indices = @transform_1, window_bounds = array<i64: 1, 1, 128>}, {transform_indices = @transform_2, window_bounds = array<i64: 1, 256, 36>}, {transform_indices = @transform_3, window_bounds = array<i64: 1, 256, 128>}]} {
    %c0 = arith.constant 0 : index
    %c0_0 = arith.constant 0 : index
    %c0_1 = arith.constant 0 : index
    %0 = vector.load %arg4[%c0, %c0_0, %c0_1] : memref<1x256x36xbf16, #tpu.memory_space<vmem>>, vector<1x256x36xbf16>
    %1 = vector.shape_cast %0 : vector<1x256x36xbf16> to vector<256x36xbf16>
    %c0_2 = arith.constant 0 : index
    %c0_3 = arith.constant 0 : index
    %c0_4 = arith.constant 0 : index
    %2 = vector.load %arg2[%c0_2, %c0_3, %c0_4] : memref<1x36x128xbf16, #tpu.memory_space<vmem>>, vector<1x36x128xbf16>
    %3 = vector.shape_cast %2 : vector<1x36x128xbf16> to vector<36x128xbf16>
    %cst = arith.constant dense<0.000000e+00> : vector<256x128xf32>
    %4 = tpu.matmul %1, %3, %cst {dimension_numbers = #tpu.dot_dimension_numbers<[1], [0], [0], [1], [0, 0, 1, 1], [], []>} : vector<256x36xbf16>, vector<36x128xbf16>, vector<256x128xf32> -> vector<256x128xf32>
    %c0_5 = arith.constant 0 : index
    %c0_6 = arith.constant 0 : index
    %c0_7 = arith.constant 0 : index
    %5 = vector.load %arg3[%c0_5, %c0_6, %c0_7] : memref<1x1x128xf32, #tpu.memory_space<vmem>>, vector<1x1x128xf32>
    %6 = vector.shape_cast %5 : vector<1x1x128xf32> to vector<1x128xf32>
    %7 = vector.broadcast %6 : vector<1x128xf32> to vector<256x128xf32>
    %8 = arith.addf %4, %7 : vector<256x128xf32>
    %9 = vector.shape_cast %8 : vector<256x128xf32> to vector<1x256x128xf32>
    %c0_8 = arith.constant 0 : index
    %c0_9 = arith.constant 0 : index
    %c0_10 = arith.constant 0 : index
    %10 = vector.load %arg5[%c0_8, %c0_9, %c0_10] : memref<1x256x128xf32, #tpu.memory_space<vmem>>, vector<1x256x128xf32>
    tpu.vector_store %arg5[%c0_8, %c0_9, %c0_10], %9 {strides = array<i32>} : memref<1x256x128xf32, #tpu.memory_space<vmem>>, vector<1x256x128xf32>,
    return
  }
  func.func @transform_0(%arg0: i32, %arg1: i32) -> (i32, i32, i32) {
    %c0_i32 = arith.constant 0 : i32
    %c0_i32_0 = arith.constant 0 : i32
    %c0_i32_1 = arith.constant 0 : i32
    return %arg0, %c0_i32, %c0_i32_0 : i32, i32, i32
  }
  func.func @transform_1(%arg0: i32, %arg1: i32) -> (i32, i32, i32) {
    %c0_i32 = arith.constant 0 : i32
    %c0_i32_0 = arith.constant 0 : i32
    %c0_i32_1 = arith.constant 0 : i32
    return %arg0, %c0_i32, %c0_i32_0 : i32, i32, i32
  }
  func.func @transform_2(%arg0: i32, %arg1: i32) -> (i32, i32, i32) {
    %c0_i32 = arith.constant 0 : i32
    %c0_i32_0 = arith.constant 0 : i32
    return %arg0, %arg1, %c0_i32 : i32, i32, i32
  }
  func.func @transform_3(%arg0: i32, %arg1: i32) -> (i32, i32, i32) {
    %c0_i32 = arith.constant 0 : i32
    %c0_i32_0 = arith.constant 0 : i32
    return %arg0, %arg1, %c0_i32 : i32, i32, i32
  }
}

</mosaic_0001>

<llo_original>
// kernel: tpu_custom_call.1
$region0: #{tpu_custom_call.1}
  #allocation0 [shape = 'u32[]', space=smem, size = 0x4, offset = 0x4, fixed_abs, tag = 'smem constant byte address 0x4 - core index']
  #allocation1 [shape = 'u32[144,128]{1,0:T(1,128)}', space=vmem, size = 0x12000, scoped, tag = 'internal scratch']
  %s0 = inlined_call_operand.vmem [shape: bf16[2,36,128], index: 0, kind: input, shape index: {}]
  %s1 = inlined_call_operand.vmem [shape: f32[2,1,128], index: 1, kind: input, shape index: {}]
  %s2 = inlined_call_operand.vmem [shape: bf16[2,256,36], index: 2, kind: input, shape index: {}]
  %s3 = inlined_call_operand.hbm [shape: f32[2,256,128], index: 3, kind: output, shape index: {}]
  %s4 = sld [smem:[#allocation0]]
  $region45: #{tpu_custom_call.1} parent=0
    _
  %s6 = ssub.s32 1, %s4
  %s7 = scalar_select 0, %s6, %s4
  $region1: #{tpu_custom_call.1} parent=0
    #allocation2 [shape = 'u8[262144]{0}', space=vmem, size = 0x40000, scoped, tag = 'output window, operand 0']
    #allocation3 [shape = 's32[2]{0}', space=sflag, size = 0x8, scoped, tag = 'scoped memory for tpu_custom_call.1']
    %8 = vsyncpa [#allocation3], 0
    %s9 = scalar_lea.sflag [#allocation3], 1
    %10 = vsyncpa %s9, 0
    loop: start=0, step=1, limit=4
    $region2: #{tpu_custom_call.1} parent=1 // loop_pre_header
      _
    $region3: #{tpu_custom_call.1} parent=1 // loop_header
      %s12 = sphi 0, %s16
      %p13 = scmp.ge.s32.totalorder %s12, 4
      %s19 = sphi 0, %s31
      %s20 = sphi 0, %s27
      %s21 = sphi 0, %s19
      %s22 = sphi 0, %s20
      %s23 = sphi 0, %s21
      %s24 = sphi 0, %s22
      %s34 = sphi 0, %s36
      %s37 = sphi 0, %s34
      %s38 = sphi 0, %s37
      %s54 = sphi 0, %s38
      %s60 = sphi 0, %s62
      %s63 = sphi 0, %s60
      %s64 = sphi 0, %s63
      %s80 = sphi 0, %s64
      %s88 = sphi 0, %s90
      %s91 = sphi 0, %s88
      %s92 = sphi 0, %s91
      %s108 = sphi 0, %s92
      %s116 = sphi 0, %s118
      %s119 = sphi 0, %s116
      %s120 = sphi 0, %s119
      %s136 = sphi 0, %s120
    $region4: #{tpu_custom_call.1} parent=1 // loop_header_branch
      %15 = sbr.rel (%p13) target = $region8
    $region5: #{tpu_custom_call.1} parent=1 // loop_body
      %s17 = ssub.s32 %s12, 1
      %s18 = ssub.s32 %s12, 2
      %s25 = sadd.s32 1, %s20
      %p26 = scmp.ge.s32.totalorder %s25, 1
      %s27 = scalar_select %p26, 0, %s25
      %s28 = sadd.s32 1, %s19
      %s29 = scalar_select %p26, %s28, %s19
      %p30 = scmp.ge.s32.totalorder %s29, 2
      %s31 = scalar_select %p30, 0, %s29
      %s32 = ssub.s32 %s19, %s31
      %p33 = scmp.eq.s32.totalorder %s32, 0
      %s35 = sadd.s32 %s34, 1
      %s36 = scalar_select %p33, %s34, %s35
      %p39 = pneg %p33
      %p40 = scmp.eq.s32.totalorder %s12, 1
      %p41 = por %p39, %p40
      %p42 = scmp.ne.s32.totalorder %s34, %s37
      %p43 = scmp.eq.s32.totalorder %s12, 0
      %p44 = por %p42, %p43
      %p45 = scmp.ne.s32.totalorder %s34, %s37
      %p46 = scmp.eq.s32.totalorder %s17, 1
      %p47 = por %p45, %p46
      %p48 = scmp.ne.s32.totalorder %s37, %s38
      %p49 = scmp.eq.s32.totalorder %s17, 0
      %p50 = por %p48, %p49
      %p51 = scmp.ne.s32.totalorder %s37, %s38
      %p52 = scmp.eq.s32.totalorder %s18, 1
      %p53 = por %p51, %p52
      %p55 = scmp.ne.s32.totalorder %s38, %s54
      %p56 = scmp.eq.s32.totalorder %s18, 0
      %p57 = por %p55, %p56
      %s58 = ssub.s32 %s19, %s31
      %p59 = scmp.eq.s32.totalorder %s58, 0
      %s61 = sadd.s32 %s60, 1
      %s62 = scalar_select %p59, %s60, %s61
      %p65 = pneg %p59
      %p66 = scmp.eq.s32.totalorder %s12, 1
      %p67 = por %p65, %p66
      %p68 = scmp.ne.s32.totalorder %s60, %s63
      %p69 = scmp.eq.s32.totalorder %s12, 0
      %p70 = por %p68, %p69
      %p71 = scmp.ne.s32.totalorder %s60, %s63
      %p72 = scmp.eq.s32.totalorder %s17, 1
      %p73 = por %p71, %p72
      %p74 = scmp.ne.s32.totalorder %s63, %s64
      %p75 = scmp.eq.s32.totalorder %s17, 0
      %p76 = por %p74, %p75
      %p77 = scmp.ne.s32.totalorder %s63, %s64
      %p78 = scmp.eq.s32.totalorder %s18, 1
      %p79 = por %p77, %p78
      %p81 = scmp.ne.s32.totalorder %s64, %s80
      %p82 = scmp.eq.s32.totalorder %s18, 0
      %p83 = por %p81, %p82
      %s84 = ssub.s32 %s19, %s31
      %s85 = ssub.s32 %s20, %s27
      %s86 = sor.u32 %s84, %s85
      %p87 = scmp.eq.s32.totalorder %s86, 0
      %s89 = sadd.s32 %s88, 1
      %s90 = scalar_select %p87, %s88, %s89
      %p93 = pneg %p87
      %p94 = scmp.eq.s32.totalorder %s12, 1
      %p95 = por %p93, %p94
      %p96 = scmp.ne.s32.totalorder %s88, %s91
      %p97 = scmp.eq.s32.totalorder %s12, 0
      %p98 = por %p96, %p97
      %p99 = scmp.ne.s32.totalorder %s88, %s91
      %p100 = scmp.eq.s32.totalorder %s17, 1
      %p101 = por %p99, %p100
      %p102 = scmp.ne.s32.totalorder %s91, %s92
      %p103 = scmp.eq.s32.totalorder %s17, 0
      %p104 = por %p102, %p103
      %p105 = scmp.ne.s32.totalorder %s91, %s92
      %p106 = scmp.eq.s32.totalorder %s18, 1
      %p107 = por %p105, %p106
      %p109 = scmp.ne.s32.totalorder %s92, %s108
      %p110 = scmp.eq.s32.totalorder %s18, 0
      %p111 = por %p109, %p110
      %s112 = ssub.s32 %s19, %s31
      %s113 = ssub.s32 %s20, %s27
      %s114 = sor.u32 %s112, %s113
      %p115 = scmp.eq.s32.totalorder %s114, 0
      %s117 = sadd.s32 %s116, 1
      %s118 = scalar_select %p115, %s116, %s117
      %p121 = pneg %p115
      %p122 = scmp.eq.s32.totalorder %s12, 1
      %p123 = por %p121, %p122
      %p124 = scmp.ne.s32.totalorder %s116, %s119
      %p125 = scmp.eq.s32.totalorder %s12, 0
      %p126 = por %p124, %p125
      %p127 = scmp.ne.s32.totalorder %s116, %s119
      %p128 = scmp.eq.s32.totalorder %s17, 1
      %p129 = por %p127, %p128
      %p130 = scmp.ne.s32.totalorder %s119, %s120
      %p131 = scmp.eq.s32.totalorder %s17, 0
      %p132 = por %p130, %p131
      %p133 = scmp.ne.s32.totalorder %s119, %s120
      %p134 = scmp.eq.s32.totalorder %s18, 1
      %p135 = por %p133, %p134
      %p137 = scmp.ne.s32.totalorder %s120, %s136
      %p138 = scmp.eq.s32.totalorder %s18, 0
      %p139 = por %p137, %p138
      %p140 = scmp.le.s32.totalorder 1, %s12
      %p141 = scmp.lt.s32.totalorder %s12, 3
      %p142 = pnand %p140, %p141
      %p143 = pneg %p142
      // Predicated region
      $region9: #{tpu_custom_call.1} parent=5 // pred_check
        _
      $region10: #{tpu_custom_call.1} parent=5 // pred_check_branch
        %145 = sbr.rel (%p142) target = $region12
      $region11: #{tpu_custom_call.1} parent=5 // pred_region
        %s146 = ssub.s32 %s12, 1
      $region12: #{tpu_custom_call.1} parent=5 // pred_fallthru
        _
      %p147 = scmp.lt.s32.totalorder %s12, 2
      // Predicated region
      $region13: #{tpu_custom_call.1} parent=5 // pred_check
        %p148 = pneg %p147
      $region14: #{tpu_custom_call.1} parent=5 // pred_check_branch
        %150 = sbr.rel (%p148) target = $region16
      $region15: #{tpu_custom_call.1} parent=5 // pred_region
        // Predicated region
        $region17: #{tpu_custom_call.1} parent=15 // pred_check
          %p151 = pneg %p44
        $region18: #{tpu_custom_call.1} parent=15 // pred_check_branch
          %153 = sbr.rel (%p151) target = $region20
        $region19: #{tpu_custom_call.1} parent=15 // pred_region
          %p154 = scmp.lt.s32.totalorder %s19, 1
          %s155 = scalar_select %p154, %s19, 1
          %s156 = smul.addr %s155, 5
          %s157 = smul.addr %s156, 4
          %s158 = scalar_lea.vmem %s0, %s157
        $region20: #{tpu_custom_call.1} parent=15 // pred_fallthru
          _
        // Predicated region
        $region21: #{tpu_custom_call.1} parent=15 // pred_check
          %p159 = pneg %p70
        $region22: #{tpu_custom_call.1} parent=15 // pred_check_branch
          %161 = sbr.rel (%p159) target = $region24
        $region23: #{tpu_custom_call.1} parent=15 // pred_region
          %p162 = scmp.lt.s32.totalorder %s19, 1
          %s163 = scalar_select %p162, %s19, 1
          %s164 = scalar_lea.vmem %s1, %s163
        $region24: #{tpu_custom_call.1} parent=15 // pred_fallthru
          _
        // Predicated region
        $region25: #{tpu_custom_call.1} parent=15 // pred_check
          %p165 = pneg %p98
        $region26: #{tpu_custom_call.1} parent=15 // pred_check_branch
          %167 = sbr.rel (%p165) target = $region28
        $region27: #{tpu_custom_call.1} parent=15 // pred_region
          %s168 = smul.u32 32, %s20
          %p169 = scmp.lt.s32.totalorder %s19, 1
          %s170 = scalar_select %p169, %s19, 1
          %p171 = scmp.lt.s32.totalorder %s168, 31
          %s172 = scalar_select %p171, %s168, 31
          %s173 = smul.addr %s170, 32
          %s174 = sadd.s32 %s172, %s173
          %s175 = smul.addr %s174, 4
          %s176 = scalar_lea.vmem %s2, %s175
          %s177 = smul.u32 32, %s20
        $region28: #{tpu_custom_call.1} parent=15 // pred_fallthru
          _
      $region16: #{tpu_custom_call.1} parent=5 // pred_fallthru
        _
      %p178 = scmp.le.s32.totalorder 1, %s12
      %p179 = scmp.lt.s32.totalorder %s12, 3
      %p180 = pnand %p178, %p179
      %p181 = pneg %p180
      // Predicated region
      $region29: #{tpu_custom_call.1} parent=5 // pred_check
        _
      $region30: #{tpu_custom_call.1} parent=5 // pred_check_branch
        %183 = sbr.rel (%p180) target = $region32
      $region31: #{tpu_custom_call.1} parent=5 // pred_region
        %s184 = ssub.s32 %s12, 1
        %p185 = scmp.lt.s32.totalorder %s21, 1
        %s186 = scalar_select %p185, %s21, 1
        %s187 = smul.addr %s186, 5
        %s188 = smul.addr %s187, 4
        %s189 = scalar_lea.vmem %s0, %s188
        %p190 = pneg %p50
        %p191 = pneg %p47
        %p192 = scmp.lt.s32.totalorder %s21, 1
        %s193 = scalar_select %p192, %s21, 1
        %s194 = scalar_lea.vmem %s1, %s193
        %p195 = pneg %p76
        %p196 = pneg %p73
        %s197 = smul.u32 32, %s22
        %p198 = scmp.lt.s32.totalorder %s21, 1
        %s199 = scalar_select %p198, %s21, 1
        %p200 = scmp.lt.s32.totalorder %s197, 31
        %s201 = scalar_select %p200, %s197, 31
        %s202 = smul.addr %s199, 32
        %s203 = sadd.s32 %s201, %s202
        %s204 = smul.addr %s203, 4
        %s205 = scalar_lea.vmem %s2, %s204
        %p206 = pneg %p104
        %p207 = pneg %p101
        %p208 = pneg %p132
        %p209 = pneg %p129
        %s210 = sand.u32 %s119, 1
        %s211 = scalar_lea.sflag [#allocation3], %s210
        %s212 = sand.u32 %s119, 1
        %s213 = smul.addr %s212, 256
        %s214 = scalar_lea.vmem [#allocation2], %s213
        %p215 = scmp.lt.s32.totalorder %s21, 1
        %s216 = scalar_select %p215, %s21, 1
        %s217 = smul.addr %s216, 5
        %s218 = smul.addr %s217, 4
        %s219 = scalar_lea.vmem %s0, %s218
        %p220 = scmp.lt.s32.totalorder %s21, 1
        %s221 = scalar_select %p220, %s21, 1
        %s222 = scalar_lea.vmem %s1, %s221
        %s223 = smul.u32 32, %s22
        %p224 = scmp.lt.s32.totalorder %s21, 1
        %s225 = scalar_select %p224, %s21, 1
        %p226 = scmp.lt.s32.totalorder %s223, 31
        %s227 = scalar_select %p226, %s223, 31
        %s228 = smul.addr %s225, 32
        %s229 = sadd.s32 %s227, %s228
        %s230 = smul.addr %s229, 4
        %s231 = scalar_lea.vmem %s2, %s230
        %s232 = smul.u32 32, %s22
        %s233 = smul.u32 32, %s22
        %v235 = vld [vmem:[%s231] sm:$0xf]
        %v236 = vld [vmem:[%s231 + $0x4] sm:$0xf]
        %v237 = vld [vmem:[%s231 + $0x8] sm:$0xf]
        %v238 = vld [vmem:[%s231 + $0xc] sm:$0xf]
        %v239 = vld [vmem:[%s231 + $0x10] sm:$0xf]
        %v240 = vld [vmem:[%s231 + $0x14] sm:$0xf]
        %v241 = vld [vmem:[%s231 + $0x18] sm:$0xf]
        %v242 = vld [vmem:[%s231 + $0x1c] sm:$0xf]
        %v243 = vld [vmem:[%s231 + $0x20] sm:$0xf]
        %v244 = vld [vmem:[%s231 + $0x24] sm:$0xf]
        %v245 = vld [vmem:[%s231 + $0x28] sm:$0xf]
        %v246 = vld [vmem:[%s231 + $0x2c] sm:$0xf]
        %v247 = vld [vmem:[%s231 + $0x30] sm:$0xf]
        %v248 = vld [vmem:[%s231 + $0x34] sm:$0xf]
        %v249 = vld [vmem:[%s231 + $0x38] sm:$0xf]
        %v250 = vld [vmem:[%s231 + $0x3c] sm:$0xf]
        %v251 = vld [vmem:[%s231 + $0x40] sm:$0xf]
        %v252 = vld [vmem:[%s231 + $0x44] sm:$0xf]
        %v253 = vld [vmem:[%s231 + $0x48] sm:$0xf]
        %v254 = vld [vmem:[%s231 + $0x4c] sm:$0xf]
        %v255 = vld [vmem:[%s231 + $0x50] sm:$0xf]
        %v256 = vld [vmem:[%s231 + $0x54] sm:$0xf]
        %v257 = vld [vmem:[%s231 + $0x58] sm:$0xf]
        %v258 = vld [vmem:[%s231 + $0x5c] sm:$0xf]
        %v259 = vld [vmem:[%s231 + $0x60] sm:$0xf]
        %v260 = vld [vmem:[%s231 + $0x64] sm:$0xf]
        %v261 = vld [vmem:[%s231 + $0x68] sm:$0xf]
        %v262 = vld [vmem:[%s231 + $0x6c] sm:$0xf]
        %v263 = vld [vmem:[%s231 + $0x70] sm:$0xf]
        %v264 = vld [vmem:[%s231 + $0x74] sm:$0xf]
        %v265 = vld [vmem:[%s231 + $0x78] sm:$0xf]
        %v266 = vld [vmem:[%s231 + $0x7c] sm:$0xf]
        %v267 = vld [vmem:[%s219] sm:$0xf]
        %v268 = vld [vmem:[%s219 + $0x4] sm:$0xf]
        %v269 = vld [vmem:[%s219 + $0x8] sm:$0xf]
        %v270 = vld [vmem:[%s219 + $0xc] sm:$0xf]
        %v271 = vld [vmem:[%s219 + $0x10] sm:$0x3]
        %v272 = vld [vmem:[%s222] sm:$0x1]
        %v274 = vlaneseq
        %v275 = vshrl.u32 %v274, 7
        %v276 = vsub.s32 0, %v275
        %v277 = vrot.slane %v272, %v276
        %v311 = vunpack.c.l.b16 %v235
        %v312 = vunpack.c.l.b16 %v236
        %v313 = vunpack.c.l.b16 %v237
        %v314 = vunpack.c.l.b16 %v238
        %v315 = vunpack.c.l.b16 %v239
        %v316 = vunpack.c.l.b16 %v240
        %v317 = vunpack.c.l.b16 %v241
        %v318 = vunpack.c.l.b16 %v242
        %v319 = vunpack.c.l.b16 %v243
        %v320 = vunpack.c.l.b16 %v244
        %v321 = vunpack.c.l.b16 %v245
        %v322 = vunpack.c.l.b16 %v246
        %v323 = vunpack.c.l.b16 %v247
        %v324 = vunpack.c.l.b16 %v248
        %v325 = vunpack.c.l.b16 %v249
        %v326 = vunpack.c.l.b16 %v250
        %v327 = vunpack.c.l.b16 %v251
        %v328 = vunpack.c.l.b16 %v252
        %v329 = vunpack.c.l.b16 %v253
        %v330 = vunpack.c.l.b16 %v254
        %v331 = vunpack.c.l.b16 %v255
        %v332 = vunpack.c.l.b16 %v256
        %v333 = vunpack.c.l.b16 %v257
        %v334 = vunpack.c.l.b16 %v258
        %v335 = vunpack.c.l.b16 %v259
        %v336 = vunpack.c.l.b16 %v260
        %v337 = vunpack.c.l.b16 %v261
        %v338 = vunpack.c.l.b16 %v262
        %v339 = vunpack.c.l.b16 %v263
        %v340 = vunpack.c.l.b16 %v264
        %v341 = vunpack.c.l.b16 %v265
        %v342 = vunpack.c.l.b16 %v266
        %v343 = vpack.c.b16 %v312, %v311
        %v344 = vpack.c.b16 %v314, %v313
        %v345 = vpack.c.b16 %v316, %v315
        %v346 = vpack.c.b16 %v318, %v317
        %v347 = vpack.c.b16 %v320, %v319
        %v348 = vpack.c.b16 %v322, %v321
        %v349 = vpack.c.b16 %v324, %v323
        %v350 = vpack.c.b16 %v326, %v325
        %v351 = vpack.c.b16 %v328, %v327
        %v352 = vpack.c.b16 %v330, %v329
        %v353 = vpack.c.b16 %v332, %v331
        %v354 = vpack.c.b16 %v334, %v333
        %v355 = vpack.c.b16 %v336, %v335
        %v356 = vpack.c.b16 %v338, %v337
        %v357 = vpack.c.b16 %v340, %v339
        %v358 = vpack.c.b16 %v342, %v341
        %v364 = vunpack.c.l.b16 %v267
        %v365 = vunpack.c.l.b16 %v268
        %v366 = vunpack.c.l.b16 %v269
        %v367 = vunpack.c.l.b16 %v270
        %v368 = vunpack.c.l.b16 %v271
        %v369 = vpack.c.b16 %v365, %v364
        %v370 = vpack.c.b16 %v367, %v366
        %v371 = vpack.c.b16 %v368, %v368
        %vm374 = vcmask 293888
        %v376 = vsel %vm374, %v343, 0
        %v379 = vsel %vm374, %v344, 0
        %v382 = vsel %vm374, %v345, 0
        %v385 = vsel %vm374, %v346, 0
        %v388 = vsel %vm374, %v347, 0
        %v391 = vsel %vm374, %v348, 0
        %v394 = vsel %vm374, %v349, 0
        %v397 = vsel %vm374, %v350, 0
        %v400 = vsel %vm374, %v351, 0
        %v403 = vsel %vm374, %v352, 0
        %v406 = vsel %vm374, %v353, 0
        %v409 = vsel %vm374, %v354, 0
        %v412 = vsel %vm374, %v355, 0
        %v415 = vsel %vm374, %v356, 0
        %v418 = vsel %vm374, %v357, 0
        %v421 = vsel %vm374, %v358, 0
        %vm423 = vcmask 1041408
        %v425 = vsel %vm423, %v371, 0
        %427 = vmatprep.subr.bf16.mxu0 0
        %428 = vmatpush1.bf16.msra.mxu0 0
        %429 = vmatprep.subr.bf16.mxu0 0
        %430 = vmatpush1.bf16.msra.mxu0 0
        %431 = vmatprep.subr.bf16.mxu0 0
        %432 = vmatpush1.bf16.msra.mxu0 0
        %433 = vmatprep.subr.bf16.mxu0 0
        %434 = vmatpush1.bf16.msra.mxu0 0
        %435 = vmatprep.subr.bf16.mxu0 0
        %436 = vmatpush1.bf16.msra.mxu0 0
        %437 = vmatprep.subr.bf16.mxu0 0
        %438 = vmatpush1.bf16.msra.mxu0 %v425
        %439 = vmatprep.subr.bf16.mxu0 0
        %440 = vmatpush1.bf16.msra.mxu0 %v370
        %441 = vmatprep.subr.bf16.mxu0 0
        %442 = vmatpush1.bf16.msra.mxu0 %v369
        %443 = vmatprep.subr.bf16.mxu0 0
        %444 = vmatpush2.bf16.msra.mxu0 0
        %445 = vmatprep.subr.bf16.mxu0 0
        %446 = vmatpush2.bf16.msra.mxu0 0
        %447 = vmatprep.subr.bf16.mxu0 0
        %448 = vmatpush2.bf16.msra.mxu0 0
        %449 = vmatprep.subr.bf16.mxu0 0
        %450 = vmatpush2.bf16.msra.mxu0 0
        %451 = vmatprep.subr.bf16.mxu0 0
        %452 = vmatpush2.bf16.msra.mxu0 0
        %453 = vmatprep.subr.bf16.mxu0 0
        %454 = vmatpush2.bf16.msra.mxu0 0
        %455 = vmatprep.subr.bf16.mxu0 0
        %456 = vmatpush2.bf16.msra.mxu0 0
        %457 = vmatprep.subr.bf16.mxu0 0
        %458 = vmatpush2.bf16.msra.mxu0 0
        %459 = vmatprep.mubr.bf16.mxu0 0
        %460 = vmatmul.mubr.bf16.gmra.mxu0 %v376
        %v461 = vpop.f32.mrf.mxu0
        %v462 = vadd.f32 %v277, %v461
        %v463 = vpop.f32.mrf.mxu0
        %v464 = vpop.f32.mrf.mxu0
        %v465 = vadd.f32 %v277, %v464
        %v466 = vpop.f32.mrf.mxu0
        %467 = vmatprep.mubr.bf16.mxu0 0
        %468 = vmatmul.mubr.bf16.gmra.mxu0 %v379
        %v469 = vpop.f32.mrf.mxu0
        %v470 = vadd.f32 %v277, %v469
        %v471 = vpop.f32.mrf.mxu0
        %v472 = vpop.f32.mrf.mxu0
        %v473 = vadd.f32 %v277, %v472
        %v474 = vpop.f32.mrf.mxu0
        %475 = vmatprep.mubr.bf16.mxu0 0
        %476 = vmatmul.mubr.bf16.gmra.mxu0 %v382
        %v477 = vpop.f32.mrf.mxu0
        %v478 = vadd.f32 %v277, %v477
        %v479 = vpop.f32.mrf.mxu0
        %v480 = vpop.f32.mrf.mxu0
        %v481 = vadd.f32 %v277, %v480
        %v482 = vpop.f32.mrf.mxu0
        %483 = vmatprep.mubr.bf16.mxu0 0
        %484 = vmatmul.mubr.bf16.gmra.mxu0 %v385
        %v485 = vpop.f32.mrf.mxu0
        %v486 = vadd.f32 %v277, %v485
        %v487 = vpop.f32.mrf.mxu0
        %v488 = vpop.f32.mrf.mxu0
        %v489 = vadd.f32 %v277, %v488
        %v490 = vpop.f32.mrf.mxu0
        %491 = vmatprep.mubr.bf16.mxu0 0
        %492 = vmatmul.mubr.bf16.gmra.mxu0 %v388
        %v493 = vpop.f32.mrf.mxu0
        %v494 = vadd.f32 %v277, %v493
        %v495 = vpop.f32.mrf.mxu0
        %v496 = vpop.f32.mrf.mxu0
        %v497 = vadd.f32 %v277, %v496
        %v498 = vpop.f32.mrf.mxu0
        %499 = vmatprep.mubr.bf16.mxu0 0
        %500 = vmatmul.mubr.bf16.gmra.mxu0 %v391
        %v501 = vpop.f32.mrf.mxu0
        %v502 = vadd.f32 %v277, %v501
        %v503 = vpop.f32.mrf.mxu0
        %v504 = vpop.f32.mrf.mxu0
        %v505 = vadd.f32 %v277, %v504
        %v506 = vpop.f32.mrf.mxu0
        %507 = vmatprep.mubr.bf16.mxu0 0
        %508 = vmatmul.mubr.bf16.gmra.mxu0 %v394
        %v509 = vpop.f32.mrf.mxu0
        %v510 = vadd.f32 %v277, %v509
        %v511 = vpop.f32.mrf.mxu0
        %v512 = vpop.f32.mrf.mxu0
        %v513 = vadd.f32 %v277, %v512
        %v514 = vpop.f32.mrf.mxu0
        %515 = vmatprep.mubr.bf16.mxu0 0
        %516 = vmatmul.mubr.bf16.gmra.mxu0 %v397
        %v517 = vpop.f32.mrf.mxu0
        %v518 = vadd.f32 %v277, %v517
        %v519 = vpop.f32.mrf.mxu0
        %v520 = vpop.f32.mrf.mxu0
        %v521 = vadd.f32 %v277, %v520
        %v522 = vpop.f32.mrf.mxu0
        %523 = vmatprep.mubr.bf16.mxu0 0
        %524 = vmatmul.mubr.bf16.gmra.mxu0 %v400
        %v525 = vpop.f32.mrf.mxu0
        %v526 = vadd.f32 %v277, %v525
        %v527 = vpop.f32.mrf.mxu0
        %v528 = vpop.f32.mrf.mxu0
        %v529 = vadd.f32 %v277, %v528
        %v530 = vpop.f32.mrf.mxu0
        %531 = vmatprep.mubr.bf16.mxu0 0
        %532 = vmatmul.mubr.bf16.gmra.mxu0 %v403
        %v533 = vpop.f32.mrf.mxu0
        %v534 = vadd.f32 %v277, %v533
        %v535 = vpop.f32.mrf.mxu0
        %v536 = vpop.f32.mrf.mxu0
        %v537 = vadd.f32 %v277, %v536
        %v538 = vpop.f32.mrf.mxu0
        %539 = vmatprep.mubr.bf16.mxu0 0
        %540 = vmatmul.mubr.bf16.gmra.mxu0 %v406
        %v541 = vpop.f32.mrf.mxu0
        %v542 = vadd.f32 %v277, %v541
        %v543 = vpop.f32.mrf.mxu0
        %v544 = vpop.f32.mrf.mxu0
        %v545 = vadd.f32 %v277, %v544
        %v546 = vpop.f32.mrf.mxu0
        %547 = vmatprep.mubr.bf16.mxu0 0
        %548 = vmatmul.mubr.bf16.gmra.mxu0 %v409
        %v549 = vpop.f32.mrf.mxu0
        %v550 = vadd.f32 %v277, %v549
        %v551 = vpop.f32.mrf.mxu0
        %v552 = vpop.f32.mrf.mxu0
        %v553 = vadd.f32 %v277, %v552
        %v554 = vpop.f32.mrf.mxu0
        %555 = vmatprep.mubr.bf16.mxu0 0
        %556 = vmatmul.mubr.bf16.gmra.mxu0 %v412
        %v557 = vpop.f32.mrf.mxu0
        %v558 = vadd.f32 %v277, %v557
        %v559 = vpop.f32.mrf.mxu0
        %v560 = vpop.f32.mrf.mxu0
        %v561 = vadd.f32 %v277, %v560
        %v562 = vpop.f32.mrf.mxu0
        %563 = vmatprep.mubr.bf16.mxu0 0
        %564 = vmatmul.mubr.bf16.gmra.mxu0 %v415
        %v565 = vpop.f32.mrf.mxu0
        %v566 = vadd.f32 %v277, %v565
        %v567 = vpop.f32.mrf.mxu0
        %v568 = vpop.f32.mrf.mxu0
        %v569 = vadd.f32 %v277, %v568
        %v570 = vpop.f32.mrf.mxu0
        %571 = vmatprep.mubr.bf16.mxu0 0
        %572 = vmatmul.mubr.bf16.gmra.mxu0 %v418
        %v573 = vpop.f32.mrf.mxu0
        %v574 = vadd.f32 %v277, %v573
        %v575 = vpop.f32.mrf.mxu0
        %v576 = vpop.f32.mrf.mxu0
        %v577 = vadd.f32 %v277, %v576
        %v578 = vpop.f32.mrf.mxu0
        %579 = vmatprep.mubr.bf16.mxu0 0
        %580 = vmatmul.mubr.bf16.gmra.mxu0 %v421
        %v581 = vpop.f32.mrf.mxu0
        %v582 = vadd.f32 %v277, %v581
        %v583 = vpop.f32.mrf.mxu0
        %v584 = vpop.f32.mrf.mxu0
        %v585 = vadd.f32 %v277, %v584
        %v586 = vpop.f32.mrf.mxu0
        %587 = vdwg.mxu0
        %588 = vst [vmem:[%s214] sm:$0xff] %v462
        %589 = vst [vmem:[%s214 + $0x8] sm:$0xff] %v465
        %590 = vst [vmem:[%s214 + $0x10] sm:$0xff] %v470
        %591 = vst [vmem:[%s214 + $0x18] sm:$0xff] %v473
        %592 = vst [vmem:[%s214 + $0x20] sm:$0xff] %v478
        %593 = vst [vmem:[%s214 + $0x28] sm:$0xff] %v481
        %594 = vst [vmem:[%s214 + $0x30] sm:$0xff] %v486
        %595 = vst [vmem:[%s214 + $0x38] sm:$0xff] %v489
        %596 = vst [vmem:[%s214 + $0x40] sm:$0xff] %v494
        %597 = vst [vmem:[%s214 + $0x48] sm:$0xff] %v497
        %598 = vst [vmem:[%s214 + $0x50] sm:$0xff] %v502
        %599 = vst [vmem:[%s214 + $0x58] sm:$0xff] %v505
        %600 = vst [vmem:[%s214 + $0x60] sm:$0xff] %v510
        %601 = vst [vmem:[%s214 + $0x68] sm:$0xff] %v513
        %602 = vst [vmem:[%s214 + $0x70] sm:$0xff] %v518
        %603 = vst [vmem:[%s214 + $0x78] sm:$0xff] %v521
        %604 = vst [vmem:[%s214 + $0x80] sm:$0xff] %v526
        %605 = vst [vmem:[%s214 + $0x88] sm:$0xff] %v529
        %606 = vst [vmem:[%s214 + $0x90] sm:$0xff] %v534
        %607 = vst [vmem:[%s214 + $0x98] sm:$0xff] %v537
        %608 = vst [vmem:[%s214 + $0xa0] sm:$0xff] %v542
        %609 = vst [vmem:[%s214 + $0xa8] sm:$0xff] %v545
        %610 = vst [vmem:[%s214 + $0xb0] sm:$0xff] %v550
        %611 = vst [vmem:[%s214 + $0xb8] sm:$0xff] %v553
        %612 = vst [vmem:[%s214 + $0xc0] sm:$0xff] %v558
        %613 = vst [vmem:[%s214 + $0xc8] sm:$0xff] %v561
        %614 = vst [vmem:[%s214 + $0xd0] sm:$0xff] %v566
        %615 = vst [vmem:[%s214 + $0xd8] sm:$0xff] %v569
        %616 = vst [vmem:[%s214 + $0xe0] sm:$0xff] %v574
        %617 = vst [vmem:[%s214 + $0xe8] sm:$0xff] %v577
        %618 = vst [vmem:[%s214 + $0xf0] sm:$0xff] %v582
        %619 = vst [vmem:[%s214 + $0xf8] sm:$0xff] %v585
        %s620 = sand.u32 %s119, 1
        %s621 = scalar_lea.sflag [#allocation3], %s620
        %s622 = sand.u32 %s119, 1
        %s623 = smul.addr %s622, 256
        %s624 = scalar_lea.vmem [#allocation2], %s623
        // Predicated region
        $region33: #{tpu_custom_call.1} parent=31 // pred_check
          %p625 = pneg %p129
        $region34: #{tpu_custom_call.1} parent=31 // pred_check_branch
          %627 = sbr.rel (%p625) target = $region36
        $region35: #{tpu_custom_call.1} parent=31 // pred_region
          %s628 = smul.u32 32, %s22
          %s630 = ssub.s32 4096, 4096
          %631 = vsyncadd %s621, %s630
          %s632 = smul.addr %s21, 32
          %s633 = sadd.s32 %s628, %s632
          %s634 = smul.addr %s633, 128
          %s635 = scalar_lea.hbm %s3, %s634
          %s636 = sshll.u32 %s624, 4
          %s637 = int_to_ptr.vmem [resolvable:$true] %s636
          %642 = dma.vmem_to_hbm [thread:$0]  %s637, 4096, %s635, %s621, 128, 128, 8
        $region36: #{tpu_custom_call.1} parent=31 // pred_fallthru
          _
      $region32: #{tpu_custom_call.1} parent=5 // pred_fallthru
        _
      %p643 = scmp.le.s32.totalorder 2, %s12
      // Predicated region
      $region37: #{tpu_custom_call.1} parent=5 // pred_check
        %p644 = pneg %p643
      $region38: #{tpu_custom_call.1} parent=5 // pred_check_branch
        %646 = sbr.rel (%p644) target = $region40
      $region39: #{tpu_custom_call.1} parent=5 // pred_region
        %s647 = ssub.s32 %s12, 2
        // Predicated region
        $region41: #{tpu_custom_call.1} parent=39 // pred_check
          %p648 = pneg %p135
        $region42: #{tpu_custom_call.1} parent=39 // pred_check_branch
          %650 = sbr.rel (%p648) target = $region44
        $region43: #{tpu_custom_call.1} parent=39 // pred_region
          %s651 = sand.u32 %s120, 1
          %s652 = scalar_lea.sflag [#allocation3], %s651
          %s653 = sand.u32 %s120, 1
          %s654 = smul.addr %s653, 256
          %s655 = scalar_lea.vmem [#allocation2], %s654
          %656 = dma.done %s652, 4096
        $region44: #{tpu_custom_call.1} parent=39 // pred_fallthru
          _
      $region40: #{tpu_custom_call.1} parent=5 // pred_fallthru
        _
    $region6: #{tpu_custom_call.1} parent=1 // loop_footer
      %s16 = sadd.s32 1, %s12
    $region7: #{tpu_custom_call.1} parent=1 // loop_footer_branch
      %11 = sbr.rel target = $region3
    $region8: #{tpu_custom_call.1} parent=1 // loop_exit
      _
    %657 = vsyncpa [#allocation3], 1
    %s658 = scalar_lea.sflag [#allocation3], 1
    %659 = vsyncpa %s658, 1

</llo_original>
